<compile_context>
chip_gen: v6e
topology: v6e:2x2x1
jax: 0.10.0
libtpu: 0.0.40
codegen_flags: <defaults>
</compile_context>

<pallas_src>
import functools
import math

import jax
import jax.numpy as jnp
from jax.experimental import pallas as pl
from jax.experimental.pallas import tpu as pltpu


def _round_up(x, m):
    return ((x + m - 1) // m) * m


def rel_pos_gather_kernel(idx_ref, emb_ref, out_ref, *, e_chunk):
    """One grid step: gather tile_rows*pack rows of the (E, D) table.

    idx_ref : (tile_rows, pack)   int32  -- positions already shifted into [0, E)
    emb_ref : (E, D)              table  -- fully VMEM-resident (constant index_map)
    out_ref : (tile_rows, pack*D)        -- lane-dense packed output block
    """
    tile_rows, pack = idx_ref.shape
    E, D = emb_ref.shape

    idx = idx_ref[...]                                       # (tile_rows, pack)

    # broadcasted_iota is not CSE'd by JAX -> build each distinct shape once.
    iota_cache = {}

    def iota_for(cs):
        if cs not in iota_cache:
            iota_cache[cs] = jax.lax.broadcasted_iota(
                jnp.int32, (tile_rows, cs), 1)
        return iota_cache[cs]

    for j in range(pack):                                    # static, small
        idx_j = idx[:, j:j + 1]                              # (tile_rows, 1)
        acc = None
        # Chunk the contraction axis so a big table never materialises a big
        # (tile_rows, E) one-hot in vregs/VMEM.
        for c0 in range(0, E, e_chunk):
            cs = min(e_chunk, E - c0)
            tbl = emb_ref[c0:c0 + cs, :]                     # static slice, no cast
            shifted = idx_j if c0 == 0 else idx_j - c0
            # One-hot in the table's dtype: exactly representable, no per-step
            # table cast, and a bf16 table -> single-pass bf16 MXU matmul.
            onehot = (iota_for(cs) == shifted).astype(tbl.dtype)
            part = jnp.dot(onehot, tbl, preferred_element_type=jnp.float32)
            acc = part if acc is None else acc + part
        # Lane-stripe store into the packed VMEM block; the HBM writeback of
        # the whole (tile_rows, pack*D) block stays dense.
        out_ref[:, j * D:(j + 1) * D] = acc.astype(out_ref.dtype)


def make_rel_pos_table(max_len, dim):
    """Mirror of RelPositionEmbedding.__init__ (non-trainable parameter)."""
    num_embedding = max_len * 2 - 1
    half_dim = dim // 2
    scale = math.log(10000.0) / (half_dim - 1)
    freqs = jnp.exp(jnp.arange(half_dim, dtype=jnp.float32) * -scale)
    rel = jnp.arange(-max_len + 1, max_len, dtype=jnp.float32)[:, None]
    ang = rel * freqs[None, :]                               # (E, half_dim)
    emb = jnp.concatenate([jnp.sin(ang), jnp.cos(ang)], axis=1)
    emb = emb.reshape(num_embedding, -1)
    if dim % 2 == 1:
        emb = jnp.concatenate(
            [emb, jnp.zeros((num_embedding, 1), jnp.float32)], axis=1)
    return emb


@functools.partial(jax.jit, static_argnames=("max_len", "tile_rows", "e_chunk"))
def rel_position_embedding(pos, emb, max_len, tile_rows=512, e_chunk=1024):
    """Forward of RelPositionEmbedding: pos (any int shape) -> pos.shape + [dim]."""
    pos_shape = tuple(pos.shape)
    E, D = (int(s) for s in emb.shape)
    n = int(math.prod(pos_shape))                            # () -> 1

    # ---- lane-dense packing: pack several gathered rows per stored row ------
    pack = 1
    if 0 < D < 128 and 128 % D == 0:
        pack = min(128 // D, 8)
        pack = math.gcd(pack, n)        # must divide n so the reshape is free
    n_rows = n // pack
    lane_w = pack * D

    idx = (pos.astype(jnp.int32) + (max_len - 1)).reshape(n_rows, pack)

    # ---- tile selection ------------------------------------------------------
    # Big tiles amortise per-step overhead; when everything fits in one default
    # tile, split into two so both v7x TensorCores get work (parallel axis).
    if n_rows <= 8:
        tr = n_rows
    elif n_rows <= tile_rows:
        tr = min(n_rows, _round_up(-(-n_rows // 2), 8))
    else:
        tr = tile_rows
    grid = (pl.cdiv(n_rows, tr),)       # partial last block is masked by Pallas

    # ---- table residency / buffering ----------------------------------------
    itemsize = jnp.dtype(emb.dtype).itemsize
    table_bytes = E * D * itemsize
    if table_bytes > 2 * 1024 * 1024:
        # Constant index_map -> the second pipeline buffer is pure VMEM waste
        # (matters most under v7x's 64 MiB VMEM).
        emb_spec = pl.BlockSpec((E, D), lambda i: (0, 0),
                                pipeline_mode=pl.Buffered(1))
        table_bufs = 1
    else:
        emb_spec = pl.BlockSpec((E, D), lambda i: (0, 0))
        table_bufs = 2

    # ---- explicit VMEM budget (v5e default scoped limit is only 16 MiB) -----
    out_tile_bytes = tr * lane_w * itemsize
    scratch_bytes = (tr * _round_up(min(E, e_chunk), 128) * 4      # one-hot
                     + 2 * tr * _round_up(D, 128) * 4              # acc/part
                     + 2 * tr * 128 * 4)                           # idx tiles
    needed = table_bufs * table_bytes + 2 * out_tile_bytes + scratch_bytes
    vmem_limit = int(min(64 * 2**20, max(32 * 2**20, 2 * needed)))

    kernel = functools.partial(rel_pos_gather_kernel, e_chunk=int(e_chunk))

    out = pl.pallas_call(
        kernel,
        out_shape=jax.ShapeDtypeStruct((n_rows, lane_w), emb.dtype),
        grid=grid,
        in_specs=[
            pl.BlockSpec((tr, pack), lambda i: (i, 0)),   # position tile
            emb_spec,                                     # full table, resident
        ],
        out_specs=pl.BlockSpec((tr, lane_w), lambda i: (i, 0)),
        compiler_params=pltpu.CompilerParams(
            dimension_semantics=("parallel",),
            vmem_limit_bytes=vmem_limit),
    )(idx, emb)

    # (n_rows, pack*D) is row-major identical to (n, D): metadata-only reshape.
    return out.reshape(pos_shape + (D,))


# ---- pure-JAX reference mirroring the PyTorch forward -----------------------
def rel_position_embedding_reference(pos, emb, max_len):
    idx = pos + (max_len - 1)
    flat = emb[idx.reshape(-1)]
    return flat.reshape(tuple(pos.shape) + (emb.shape[1],))


if __name__ == "__main__":
    max_len, dim = 16, 32           # table: (2*16-1, 32) = (31, 32)
    B, T = 2, 100                   # pos (2, 100) -> 200 lookups

    emb = make_rel_pos_table(max_len, dim)

    key = jax.random.PRNGKey(0)
    pos = jax.random.randint(key, (B, T), -max_len + 1, max_len,
                             dtype=jnp.int32)   # valid relative positions

    out = rel_position_embedding(pos, emb, max_len=max_len)
    out = jax.block_until_ready(out)

    ref = rel_position_embedding_reference(pos, emb, max_len)
    ref = jax.block_until_ready(ref)

    assert out.shape == (B, T, dim), out.shape
    # f32 one-hot selection is exact up to the MXU's multi-pass f32 rounding;
    # 1e-5 comfortably covers all TPU generations (a wrong gather would be O(1)).
    assert jnp.allclose(out, ref, rtol=1e-5, atol=1e-5), \
        float(jnp.max(jnp.abs(out - ref)))
    print("KERNEL_OK")
</pallas_src>

<mosaic_0001>
module attributes {stable_mosaic.version = 11 : i64} {
  func.func @rel_pos_gather_kernel(%arg0: i32, %arg1: memref<32x4xi32, #tpu.memory_space<vmem>>, %arg2: memref<31x32xf32, #tpu.memory_space<vmem>>, %arg3: memref<32x128xf32, #tpu.memory_space<vmem>>) attributes {dimension_semantics = [#tpu.dimension_semantics<parallel>], iteration_bounds = array<i64: 2>, scalar_prefetch = 0 : i64, scratch_operands = 0 : i64, tpu.core_type = #tpu.core_type<tc>, window_params = [{transform_indices = @transform_0, window_bounds = array<i64: 32, 4>}, {pipeline_mode = #tpu.pipeline_mode<synchronous>, transform_indices = @transform_1, window_bounds = array<i64: 31, 32>}, {transform_indices = @transform_2, window_bounds = array<i64: 32, 128>}]} {
    %c0 = arith.constant 0 : index
    %c0_0 = arith.constant 0 : index
    %0 = vector.load %arg1[%c0, %c0_0] : memref<32x4xi32, #tpu.memory_space<vmem>>, vector<32x4xi32>
    %1 = vector.extract_strided_slice %0 {offsets = [0, 0], sizes = [32, 1], strides = [1, 1]} : vector<32x4xi32> to vector<32x1xi32>
    %c0_1 = arith.constant 0 : index
    %c0_2 = arith.constant 0 : index
    %2 = vector.load %arg2[%c0_1, %c0_2] : memref<31x32xf32, #tpu.memory_space<vmem>>, vector<31x32xf32>
    %3 = tpu.iota {dimensions = array<i32: 1>} : vector<32x31xi32>
    %4 = vector.broadcast %1 : vector<32x1xi32> to vector<32x31xi32>
    %5 = arith.cmpi eq, %3, %4 : vector<32x31xi32>
    %6 = arith.extui %5 : vector<32x31xi1> to vector<32x31xi32>
    %7 = arith.sitofp %6 : vector<32x31xi32> to vector<32x31xf32>
    %cst = arith.constant dense<0.000000e+00> : vector<32x32xf32>
    %8 = tpu.matmul %7, %2, %cst {dimension_numbers = #tpu.dot_dimension_numbers<[1], [0], [0], [1], [0, 0, 1, 1], [], []>} : vector<32x31xf32>, vector<31x32xf32>, vector<32x32xf32> -> vector<32x32xf32>
    %c0_3 = arith.constant 0 : index
    %c0_4 = arith.constant 0 : index
    %9 = vector.load %arg3[%c0_3, %c0_4] : memref<32x128xf32, #tpu.memory_space<vmem>>, vector<32x32xf32>
    tpu.vector_store %arg3[%c0_3, %c0_4], %8 {strides = array<i32>} : memref<32x128xf32, #tpu.memory_space<vmem>>, vector<32x32xf32>,
    %10 = vector.extract_strided_slice %0 {offsets = [0, 1], sizes = [32, 1], strides = [1, 1]} : vector<32x4xi32> to vector<32x1xi32>
    %c0_5 = arith.constant 0 : index
    %c0_6 = arith.constant 0 : index
    %11 = vector.load %arg2[%c0_5, %c0_6] : memref<31x32xf32, #tpu.memory_space<vmem>>, vector<31x32xf32>
    %12 = vector.broadcast %10 : vector<32x1xi32> to vector<32x31xi32>
    %13 = arith.cmpi eq, %3, %12 : vector<32x31xi32>
    %14 = arith.extui %13 : vector<32x31xi1> to vector<32x31xi32>
    %15 = arith.sitofp %14 : vector<32x31xi32> to vector<32x31xf32>
    %cst_7 = arith.constant dense<0.000000e+00> : vector<32x32xf32>
    %16 = tpu.matmul %15, %11, %cst_7 {dimension_numbers = #tpu.dot_dimension_numbers<[1], [0], [0], [1], [0, 0, 1, 1], [], []>} : vector<32x31xf32>, vector<31x32xf32>, vector<32x32xf32> -> vector<32x32xf32>
    %c0_8 = arith.constant 0 : index
    %c32 = arith.constant 32 : index
    %17 = vector.load %arg3[%c0_8, %c32] : memref<32x128xf32, #tpu.memory_space<vmem>>, vector<32x32xf32>
    tpu.vector_store %arg3[%c0_8, %c32], %16 {strides = array<i32>} : memref<32x128xf32, #tpu.memory_space<vmem>>, vector<32x32xf32>,
    %18 = vector.extract_strided_slice %0 {offsets = [0, 2], sizes = [32, 1], strides = [1, 1]} : vector<32x4xi32> to vector<32x1xi32>
    %c0_9 = arith.constant 0 : index
    %c0_10 = arith.constant 0 : index
    %19 = vector.load %arg2[%c0_9, %c0_10] : memref<31x32xf32, #tpu.memory_space<vmem>>, vector<31x32xf32>
    %20 = vector.broadcast %18 : vector<32x1xi32> to vector<32x31xi32>
    %21 = arith.cmpi eq, %3, %20 : vector<32x31xi32>
    %22 = arith.extui %21 : vector<32x31xi1> to vector<32x31xi32>
    %23 = arith.sitofp %22 : vector<32x31xi32> to vector<32x31xf32>
    %cst_11 = arith.constant dense<0.000000e+00> : vector<32x32xf32>
    %24 = tpu.matmul %23, %19, %cst_11 {dimension_numbers = #tpu.dot_dimension_numbers<[1], [0], [0], [1], [0, 0, 1, 1], [], []>} : vector<32x31xf32>, vector<31x32xf32>, vector<32x32xf32> -> vector<32x32xf32>
    %c0_12 = arith.constant 0 : index
    %c64 = arith.constant 64 : index
    %25 = vector.load %arg3[%c0_12, %c64] : memref<32x128xf32, #tpu.memory_space<vmem>>, vector<32x32xf32>
    tpu.vector_store %arg3[%c0_12, %c64], %24 {strides = array<i32>} : memref<32x128xf32, #tpu.memory_space<vmem>>, vector<32x32xf32>,
    %26 = vector.extract_strided_slice %0 {offsets = [0, 3], sizes = [32, 1], strides = [1, 1]} : vector<32x4xi32> to vector<32x1xi32>
    %c0_13 = arith.constant 0 : index
    %c0_14 = arith.constant 0 : index
    %27 = vector.load %arg2[%c0_13, %c0_14] : memref<31x32xf32, #tpu.memory_space<vmem>>, vector<31x32xf32>
    %28 = vector.broadcast %26 : vector<32x1xi32> to vector<32x31xi32>
    %29 = arith.cmpi eq, %3, %28 : vector<32x31xi32>
    %30 = arith.extui %29 : vector<32x31xi1> to vector<32x31xi32>
    %31 = arith.sitofp %30 : vector<32x31xi32> to vector<32x31xf32>
    %cst_15 = arith.constant dense<0.000000e+00> : vector<32x32xf32>
    %32 = tpu.matmul %31, %27, %cst_15 {dimension_numbers = #tpu.dot_dimension_numbers<[1], [0], [0], [1], [0, 0, 1, 1], [], []>} : vector<32x31xf32>, vector<31x32xf32>, vector<32x32xf32> -> vector<32x32xf32>
    %c0_16 = arith.constant 0 : index
    %c96 = arith.constant 96 : index
    %33 = vector.load %arg3[%c0_16, %c96] : memref<32x128xf32, #tpu.memory_space<vmem>>, vector<32x32xf32>
    tpu.vector_store %arg3[%c0_16, %c96], %32 {strides = array<i32>} : memref<32x128xf32, #tpu.memory_space<vmem>>, vector<32x32xf32>,
    return
  }
  func.func @transform_0(%arg0: i32) -> (i32, i32) {
    %c0_i32 = arith.constant 0 : i32
    %c0_i32_0 = arith.constant 0 : i32
    return %arg0, %c0_i32 : i32, i32
  }
  func.func @transform_1(%arg0: i32) -> (i32, i32) {
    %c0_i32 = arith.constant 0 : i32
    %c0_i32_0 = arith.constant 0 : i32
    %c0_i32_1 = arith.constant 0 : i32
    return %c0_i32, %c0_i32_0 : i32, i32
  }
  func.func @transform_2(%arg0: i32) -> (i32, i32) {
    %c0_i32 = arith.constant 0 : i32
    %c0_i32_0 = arith.constant 0 : i32
    return %arg0, %c0_i32 : i32, i32
  }
}

</mosaic_0001>

<llo_original>
// kernel: rel_position_embedding.1
$region0: #{rel_position_embedding.1}
  #allocation0 [shape = 'u32[]', space=smem, size = 0x4, offset = 0x4, fixed_abs, tag = 'smem constant byte address 0x4 - core index']
  #allocation1 [shape = 'u32[144,128]{1,0:T(1,128)}', space=vmem, size = 0x12000, scoped, tag = 'internal scratch']
  %s0 = inlined_call_operand.vmem [shape: s32[50,4], index: 0, kind: input, shape index: {}]
  %s1 = inlined_call_operand.vmem [shape: f32[31,32], index: 1, kind: input, shape index: {}]
  %s2 = inlined_call_operand.vmem [shape: f32[50,128], index: 2, kind: output, shape index: {}]
  %s3 = sld [smem:[#allocation0]]
  $region89: #{rel_position_embedding.1} parent=0
    _
  %s5 = ssub.s32 1, %s3
  %s6 = scalar_select 0, %s5, %s3
  $region1: #{rel_position_embedding.1} parent=0
    #allocation2 [shape = 'u8[32768]{0}', space=vmem, size = 0x8000, scoped, tag = 'output window, operand 0']
    loop: start=0, step=1, limit=4
    $region2: #{rel_position_embedding.1} parent=1 // loop_pre_header
      _
    $region3: #{rel_position_embedding.1} parent=1 // loop_header
      %s8 = sphi 0, %s12
      %p9 = scmp.ge.s32.totalorder %s8, 4
      %s18 = sphi 0, %s20
      %s21 = sphi 0, %s18
      %s22 = sphi 0, %s21
      %s38 = sphi 0, %s22
      %s42 = sphi 0, %s42
      %s44 = sphi 0, %s42
      %s45 = sphi 0, %s44
      %s59 = sphi 0, %s45
      %s65 = sphi 0, %s67
      %s68 = sphi 0, %s65
      %s69 = sphi 0, %s68
      %s85 = sphi 0, %s69
    $region4: #{rel_position_embedding.1} parent=1 // loop_header_branch
      %11 = sbr.rel (%p9) target = $region8
    $region5: #{rel_position_embedding.1} parent=1 // loop_body
      %s13 = ssub.s32 %s8, 1
      %s14 = ssub.s32 %s8, 2
      %s15 = sadd.s32 %s8, 1
      %s16 = ssub.s32 %s8, %s15
      %p17 = scmp.eq.s32.totalorder %s16, 0
      %s19 = sadd.s32 %s18, 1
      %s20 = scalar_select %p17, %s18, %s19
      %p23 = pneg %p17
      %p24 = scmp.eq.s32.totalorder %s8, 1
      %p25 = por %p23, %p24
      %p26 = scmp.ne.s32.totalorder %s18, %s21
      %p27 = scmp.eq.s32.totalorder %s8, 0
      %p28 = por %p26, %p27
      %p29 = scmp.ne.s32.totalorder %s18, %s21
      %p30 = scmp.eq.s32.totalorder %s13, 1
      %p31 = por %p29, %p30
      %p32 = scmp.ne.s32.totalorder %s21, %s22
      %p33 = scmp.eq.s32.totalorder %s13, 0
      %p34 = por %p32, %p33
      %p35 = scmp.ne.s32.totalorder %s21, %s22
      %p36 = scmp.eq.s32.totalorder %s14, 1
      %p37 = por %p35, %p36
      %p39 = scmp.ne.s32.totalorder %s22, %s38
      %p40 = scmp.eq.s32.totalorder %s14, 0
      %p41 = por %p39, %p40
      %s43 = sadd.s32 %s42, 1
      %p46 = scmp.eq.s32.totalorder %s8, 1
      %p47 = scmp.ne.s32.totalorder %s42, %s44
      %p48 = scmp.eq.s32.totalorder %s8, 0
      %p49 = por %p47, %p48
      %p50 = scmp.ne.s32.totalorder %s42, %s44
      %p51 = scmp.eq.s32.totalorder %s13, 1
      %p52 = por %p50, %p51
      %p53 = scmp.ne.s32.totalorder %s44, %s45
      %p54 = scmp.eq.s32.totalorder %s13, 0
      %p55 = por %p53, %p54
      %p56 = scmp.ne.s32.totalorder %s44, %s45
      %p57 = scmp.eq.s32.totalorder %s14, 1
      %p58 = por %p56, %p57
      %p60 = scmp.ne.s32.totalorder %s45, %s59
      %p61 = scmp.eq.s32.totalorder %s14, 0
      %p62 = por %p60, %p61
      %s63 = ssub.s32 %s8, %s15
      %p64 = scmp.eq.s32.totalorder %s63, 0
      %s66 = sadd.s32 %s65, 1
      %s67 = scalar_select %p64, %s65, %s66
      %p70 = pneg %p64
      %p71 = scmp.eq.s32.totalorder %s8, 1
      %p72 = por %p70, %p71
      %p73 = scmp.ne.s32.totalorder %s65, %s68
      %p74 = scmp.eq.s32.totalorder %s8, 0
      %p75 = por %p73, %p74
      %p76 = scmp.ne.s32.totalorder %s65, %s68
      %p77 = scmp.eq.s32.totalorder %s13, 1
      %p78 = por %p76, %p77
      %p79 = scmp.ne.s32.totalorder %s68, %s69
      %p80 = scmp.eq.s32.totalorder %s13, 0
      %p81 = por %p79, %p80
      %p82 = scmp.ne.s32.totalorder %s68, %s69
      %p83 = scmp.eq.s32.totalorder %s14, 1
      %p84 = por %p82, %p83
      %p86 = scmp.ne.s32.totalorder %s69, %s85
      %p87 = scmp.eq.s32.totalorder %s14, 0
      %p88 = por %p86, %p87
      %p89 = scmp.le.s32.totalorder 1, %s8
      %p90 = scmp.lt.s32.totalorder %s8, 3
      %p91 = pnand %p89, %p90
      %p92 = pneg %p91
      // Predicated region
      $region9: #{rel_position_embedding.1} parent=5 // pred_check
        _
      $region10: #{rel_position_embedding.1} parent=5 // pred_check_branch
        %94 = sbr.rel (%p91) target = $region12
      $region11: #{rel_position_embedding.1} parent=5 // pred_region
        %s95 = ssub.s32 %s8, 1
        // Predicated region
        $region13: #{rel_position_embedding.1} parent=11 // pred_check
          %p96 = pneg %p55
        $region14: #{rel_position_embedding.1} parent=11 // pred_check_branch
          %98 = sbr.rel (%p96) target = $region16
        $region15: #{rel_position_embedding.1} parent=11 // pred_region
          _
        $region16: #{rel_position_embedding.1} parent=11 // pred_fallthru
          _
      $region12: #{rel_position_embedding.1} parent=5 // pred_fallthru
        _
      %p99 = scmp.lt.s32.totalorder %s8, 2
      // Predicated region
      $region17: #{rel_position_embedding.1} parent=5 // pred_check
        %p100 = pneg %p99
      $region18: #{rel_position_embedding.1} parent=5 // pred_check_branch
        %102 = sbr.rel (%p100) target = $region20
      $region19: #{rel_position_embedding.1} parent=5 // pred_region
        // Predicated region
        $region21: #{rel_position_embedding.1} parent=19 // pred_check
          %p103 = pneg %p28
        $region22: #{rel_position_embedding.1} parent=19 // pred_check_branch
          %105 = sbr.rel (%p103) target = $region24
        $region23: #{rel_position_embedding.1} parent=19 // pred_region
          %s106 = smul.u32 4, %s8
          %s107 = ssub.s32 7, %s106
          %p108 = scmp.lt.s32.totalorder %s107, 4
          %s109 = scalar_select %p108, %s107, 4
          %s110 = smul.u32 128, %s109
          %p111 = scmp.lt.s32.totalorder %s106, 6
          %s112 = scalar_select %p111, %s106, 6
          %s113 = smul.addr %s112, 8
          %s114 = scalar_lea.vmem %s0, %s113
          %s115 = smul.u32 4, %s8
          %s116 = ssub.s32 7, %s115
          %p117 = scmp.lt.s32.totalorder %s116, 4
          %s118 = scalar_select %p117, %s116, 4
          %s119 = smul.u32 128, %s118
        $region24: #{rel_position_embedding.1} parent=19 // pred_fallthru
          _
      $region20: #{rel_position_embedding.1} parent=5 // pred_fallthru
        _
      %p120 = scmp.le.s32.totalorder 1, %s8
      %p121 = scmp.lt.s32.totalorder %s8, 3
      %p122 = pnand %p120, %p121
      %p123 = pneg %p122
      // Predicated region
      $region25: #{rel_position_embedding.1} parent=5 // pred_check
        _
      $region26: #{rel_position_embedding.1} parent=5 // pred_check_branch
        %125 = sbr.rel (%p122) target = $region28
      $region27: #{rel_position_embedding.1} parent=5 // pred_region
        %s126 = ssub.s32 %s8, 1
        %s127 = smul.u32 4, %s13
        %s128 = ssub.s32 7, %s127
        %p129 = scmp.lt.s32.totalorder %s128, 4
        %s130 = scalar_select %p129, %s128, 4
        %s131 = smul.u32 128, %s130
        %p132 = scmp.lt.s32.totalorder %s127, 6
        %s133 = scalar_select %p132, %s127, 6
        %s134 = smul.addr %s133, 8
        %s135 = scalar_lea.vmem %s0, %s134
        %p136 = pneg %p34
        %p137 = pneg %p31
        %p138 = pneg %p55
        %p139 = pneg %p52
        %p140 = pneg %p81
        %p141 = pneg %p78
        %s142 = sand.u32 %s68, 1
        %s143 = sand.u32 %s68, 1
        %s144 = smul.addr %s143, 32
        %s145 = scalar_lea.vmem [#allocation2], %s144
        %s146 = smul.u32 4, %s13
        %s147 = ssub.s32 7, %s146
        %p148 = scmp.lt.s32.totalorder %s147, 4
        %s149 = scalar_select %p148, %s147, 4
        %s150 = smul.u32 128, %s149
        %p151 = scmp.lt.s32.totalorder %s146, 6
        %s152 = scalar_select %p151, %s146, 6
        %s153 = smul.addr %s152, 8
        %s154 = scalar_lea.vmem %s0, %s153
        %s155 = smul.u32 4, %s13
        %s156 = ssub.s32 7, %s155
        %p157 = scmp.lt.s32.totalorder %s156, 4
        %s158 = scalar_select %p157, %s156, 4
        %s159 = smul.u32 128, %s158
        %s160 = smul.u32 4, %s13
        %s161 = ssub.s32 7, %s160
        %p162 = scmp.lt.s32.totalorder %s161, 4
        %s163 = scalar_select %p162, %s161, 4
        %s164 = smul.u32 128, %s163
        %v165 = vld [vmem:[%s154] sm:$0xff]
        %v166 = vld [vmem:[%s154 + $0x8] sm:$0xff]
        %v167 = vld [vmem:[%s154 + $0x10] sm:$0xff]
        %v168 = vld [vmem:[%s154 + $0x18] sm:$0xff]
        %v169 = vld [vmem:[%s1] sm:$0xff]
        %v170 = vld [vmem:[%s1 + $0x8] sm:$0xff]
        %v171 = vld [vmem:[%s1 + $0x10] sm:$0xff]
        %v172 = vld [vmem:[%s1 + $0x18] sm:$0x7f]
        %v173 = vlaneseq
        %v174 = vand.u32 %v173, 127
        %175 = vset.pattern.permute.xlu0 0
        %176 = vperm.xlu0 %175, %v165
        %v177 = vpop.permute.xlu0 %176
        %178 = vset.pattern.permute.xlu0 0
        %179 = vperm.xlu0 %178, %v166
        %v180 = vpop.permute.xlu0 %179
        %181 = vset.pattern.permute.xlu0 0
        %182 = vperm.xlu0 %181, %v167
        %v183 = vpop.permute.xlu0 %182
        %184 = vset.pattern.permute.xlu0 0
        %185 = vperm.xlu0 %184, %v168
        %v186 = vpop.permute.xlu0 %185
        %vm187 = vcmp.eq.s32.totalorder %v174, %v177
        %vm188 = vcmp.eq.s32.totalorder %v174, %v180
        %vm189 = vcmp.eq.s32.totalorder %v174, %v183
        %vm190 = vcmp.eq.s32.totalorder %v174, %v186
        %v191 = vsel %vm187, 1, 0
        %v192 = vsel %vm188, 1, 0
        %v193 = vsel %vm189, 1, 0
        %v194 = vsel %vm190, 1, 0
        %v195 = vcvt.s32.f32 %v191
        %v196 = vcvt.s32.f32 %v192
        %v197 = vcvt.s32.f32 %v193
        %v198 = vcvt.s32.f32 %v194
        %vm199 = vcmask 252928
        %v201 = vsel %vm199, %v195, 0
        %v204 = vsel %vm199, %v196, 0
        %v207 = vsel %vm199, %v197, 0
        %v210 = vsel %vm199, %v198, 0
        %vm212 = vcmask 1046528
        %v214 = vsel %vm212, %v172, 0
        %216 = vmatprep.subr.mxu0 0.0
        %217 = vmatpush1.msra.mxu0 0.0
        %218 = vmatprep.subr.mxu0 0.0
        %219 = vmatpush1.msra.mxu0 0.0
        %220 = vmatprep.subr.mxu0 0.0
        %221 = vmatpush1.msra.mxu0 0.0
        %222 = vmatprep.subr.mxu0 0.0
        %223 = vmatpush1.msra.mxu0 0.0
        %224 = vmatprep.subr.mxu0 0.0
        %225 = vmatpush1.msra.mxu0 0.0
        %226 = vmatprep.subr.mxu0 0.0
        %227 = vmatpush1.msra.mxu0 0.0
        %228 = vmatprep.subr.mxu0 0.0
        %229 = vmatpush1.msra.mxu0 0.0
        %230 = vmatprep.subr.mxu0 0.0
        %231 = vmatpush1.msra.mxu0 0.0
        %232 = vmatprep.subr.mxu0 0.0
        %233 = vmatpush1.msra.mxu0 0.0
        %234 = vmatprep.subr.mxu0 0.0
        %235 = vmatpush1.msra.mxu0 0.0
        %236 = vmatprep.subr.mxu0 0.0
        %237 = vmatpush1.msra.mxu0 0.0
        %238 = vmatprep.subr.mxu0 0.0
        %239 = vmatpush1.msra.mxu0 0.0
        %240 = vmatprep.subr.mxu0 0.0
        %241 = vmatpush1.msra.mxu0 %v214
        %242 = vmatprep.subr.mxu0 0.0
        %243 = vmatpush1.msra.mxu0 %v171
        %244 = vmatprep.subr.mxu0 0.0
        %245 = vmatpush1.msra.mxu0 %v170
        %246 = vmatprep.subr.mxu0 0.0
        %247 = vmatpush1.msra.mxu0 %v169
        %248 = vmatprep.subr.mxu0 0.0
        %249 = vmatpush2.msra.mxu0 0.0
        %250 = vmatprep.subr.mxu0 0.0
        %251 = vmatpush2.msra.mxu0 0.0
        %252 = vmatprep.subr.mxu0 0.0
        %253 = vmatpush2.msra.mxu0 0.0
        %254 = vmatprep.subr.mxu0 0.0
        %255 = vmatpush2.msra.mxu0 0.0
        %256 = vmatprep.subr.mxu0 0.0
        %257 = vmatpush2.msra.mxu0 0.0
        %258 = vmatprep.subr.mxu0 0.0
        %259 = vmatpush2.msra.mxu0 0.0
        %260 = vmatprep.subr.mxu0 0.0
        %261 = vmatpush2.msra.mxu0 0.0
        %262 = vmatprep.subr.mxu0 0.0
        %263 = vmatpush2.msra.mxu0 0.0
        %264 = vmatprep.subr.mxu0 0.0
        %265 = vmatpush2.msra.mxu0 0.0
        %266 = vmatprep.subr.mxu0 0.0
        %267 = vmatpush2.msra.mxu0 0.0
        %268 = vmatprep.subr.mxu0 0.0
        %269 = vmatpush2.msra.mxu0 0.0
        %270 = vmatprep.subr.mxu0 0.0
        %271 = vmatpush2.msra.mxu0 0.0
        %272 = vmatprep.subr.mxu0 0.0
        %273 = vmatpush2.msra.mxu0 0.0
        %274 = vmatprep.subr.mxu0 0.0
        %275 = vmatpush2.msra.mxu0 0.0
        %276 = vmatprep.subr.mxu0 0.0
        %277 = vmatpush2.msra.mxu0 0.0
        %278 = vmatprep.subr.mxu0 0.0
        %279 = vmatpush2.msra.mxu0 0.0
        %280 = vmatprep.mubr.f32.mxu0 0.0
        %281 = vmatmul.mubr.f32.gmra.mxu0 %v201
        %v282 = vpop.f32.mrf.mxu0
        %v283 = vadd.f32 0.0, %v282
        %v284 = vpop.f32.mrf.mxu0
        %285 = vmatprep.mubr.f32.mxu0 0.0
        %286 = vmatmul.mubr.f32.gmra.mxu0 %v204
        %v287 = vpop.f32.mrf.mxu0
        %v288 = vadd.f32 0.0, %v287
        %v289 = vpop.f32.mrf.mxu0
        %290 = vmatprep.mubr.f32.mxu0 0.0
        %291 = vmatmul.mubr.f32.gmra.mxu0 %v207
        %v292 = vpop.f32.mrf.mxu0
        %v293 = vadd.f32 0.0, %v292
        %v294 = vpop.f32.mrf.mxu0
        %295 = vmatprep.mubr.f32.mxu0 0.0
        %296 = vmatmul.mubr.f32.gmra.mxu0 %v210
        %v297 = vpop.f32.mrf.mxu0
        %v298 = vadd.f32 0.0, %v297
        %v299 = vpop.f32.mrf.mxu0
        %300 = vdwg.mxu0
        %vm301 = vcmask 261120
        %302 = vst.msk [vmem:[%s145] sm:$0xff] %vm301, %v283
        %303 = vst.msk [vmem:[%s145 + $0x8] sm:$0xff] %vm301, %v288
        %304 = vst.msk [vmem:[%s145 + $0x10] sm:$0xff] %vm301, %v293
        %305 = vst.msk [vmem:[%s145 + $0x18] sm:$0xff] %vm301, %v298
        %v306 = vld [vmem:[%s1] sm:$0xff]
        %v307 = vld [vmem:[%s1 + $0x8] sm:$0xff]
        %v308 = vld [vmem:[%s1 + $0x10] sm:$0xff]
        %v309 = vld [vmem:[%s1 + $0x18] sm:$0x7f]
        %310 = vset.pattern.permute.xlu0 1
        %311 = vperm.xlu0 %310, %v165
        %v312 = vpop.permute.xlu0 %311
        %313 = vset.pattern.permute.xlu0 1
        %314 = vperm.xlu0 %313, %v166
        %v315 = vpop.permute.xlu0 %314
        %316 = vset.pattern.permute.xlu0 1
        %317 = vperm.xlu0 %316, %v167
        %v318 = vpop.permute.xlu0 %317
        %319 = vset.pattern.permute.xlu0 1
        %320 = vperm.xlu0 %319, %v168
        %v321 = vpop.permute.xlu0 %320
        %vm322 = vcmp.eq.s32.totalorder %v174, %v312
        %vm323 = vcmp.eq.s32.totalorder %v174, %v315
        %vm324 = vcmp.eq.s32.totalorder %v174, %v318
        %vm325 = vcmp.eq.s32.totalorder %v174, %v321
        %v326 = vsel %vm322, 1, 0
        %v327 = vsel %vm323, 1, 0
        %v328 = vsel %vm324, 1, 0
        %v329 = vsel %vm325, 1, 0
        %v330 = vcvt.s32.f32 %v326
        %v331 = vcvt.s32.f32 %v327
        %v332 = vcvt.s32.f32 %v328
        %v333 = vcvt.s32.f32 %v329
        %v335 = vsel %vm199, %v330, 0
        %v338 = vsel %vm199, %v331, 0
        %v341 = vsel %vm199, %v332, 0
        %v344 = vsel %vm199, %v333, 0
        %v347 = vsel %vm212, %v309, 0
        %349 = vmatprep.subr.mxu0 0.0
        %350 = vmatpush1.msra.mxu0 0.0
        %351 = vmatprep.subr.mxu0 0.0
        %352 = vmatpush1.msra.mxu0 0.0
        %353 = vmatprep.subr.mxu0 0.0
        %354 = vmatpush1.msra.mxu0 0.0
        %355 = vmatprep.subr.mxu0 0.0
        %356 = vmatpush1.msra.mxu0 0.0
        %357 = vmatprep.subr.mxu0 0.0
        %358 = vmatpush1.msra.mxu0 0.0
        %359 = vmatprep.subr.mxu0 0.0
        %360 = vmatpush1.msra.mxu0 0.0
        %361 = vmatprep.subr.mxu0 0.0
        %362 = vmatpush1.msra.mxu0 0.0
        %363 = vmatprep.subr.mxu0 0.0
        %364 = vmatpush1.msra.mxu0 0.0
        %365 = vmatprep.subr.mxu0 0.0
        %366 = vmatpush1.msra.mxu0 0.0
        %367 = vmatprep.subr.mxu0 0.0
        %368 = vmatpush1.msra.mxu0 0.0
        %369 = vmatprep.subr.mxu0 0.0
        %370 = vmatpush1.msra.mxu0 0.0
        %371 = vmatprep.subr.mxu0 0.0
        %372 = vmatpush1.msra.mxu0 0.0
        %373 = vmatprep.subr.mxu0 0.0
        %374 = vmatpush1.msra.mxu0 %v347
        %375 = vmatprep.subr.mxu0 0.0
        %376 = vmatpush1.msra.mxu0 %v308
        %377 = vmatprep.subr.mxu0 0.0
        %378 = vmatpush1.msra.mxu0 %v307
        %379 = vmatprep.subr.mxu0 0.0
        %380 = vmatpush1.msra.mxu0 %v306
        %381 = vmatprep.subr.mxu0 0.0
        %382 = vmatpush2.msra.mxu0 0.0
        %383 = vmatprep.subr.mxu0 0.0
        %384 = vmatpush2.msra.mxu0 0.0
        %385 = vmatprep.subr.mxu0 0.0
        %386 = vmatpush2.msra.mxu0 0.0
        %387 = vmatprep.subr.mxu0 0.0
        %388 = vmatpush2.msra.mxu0 0.0
        %389 = vmatprep.subr.mxu0 0.0
        %390 = vmatpush2.msra.mxu0 0.0
        %391 = vmatprep.subr.mxu0 0.0
        %392 = vmatpush2.msra.mxu0 0.0
        %393 = vmatprep.subr.mxu0 0.0
        %394 = vmatpush2.msra.mxu0 0.0
        %395 = vmatprep.subr.mxu0 0.0
        %396 = vmatpush2.msra.mxu0 0.0
        %397 = vmatprep.subr.mxu0 0.0
        %398 = vmatpush2.msra.mxu0 0.0
        %399 = vmatprep.subr.mxu0 0.0
        %400 = vmatpush2.msra.mxu0 0.0
        %401 = vmatprep.subr.mxu0 0.0
        %402 = vmatpush2.msra.mxu0 0.0
        %403 = vmatprep.subr.mxu0 0.0
        %404 = vmatpush2.msra.mxu0 0.0
        %405 = vmatprep.subr.mxu0 0.0
        %406 = vmatpush2.msra.mxu0 0.0
        %407 = vmatprep.subr.mxu0 0.0
        %408 = vmatpush2.msra.mxu0 0.0
        %409 = vmatprep.subr.mxu0 0.0
        %410 = vmatpush2.msra.mxu0 0.0
        %411 = vmatprep.subr.mxu0 0.0
        %412 = vmatpush2.msra.mxu0 0.0
        %413 = vmatprep.mubr.f32.mxu0 0.0
        %414 = vmatmul.mubr.f32.gmra.mxu0 %v335
        %v415 = vpop.f32.mrf.mxu0
        %v416 = vadd.f32 0.0, %v415
        %v417 = vpop.f32.mrf.mxu0
        %418 = vmatprep.mubr.f32.mxu0 0.0
        %419 = vmatmul.mubr.f32.gmra.mxu0 %v338
        %v420 = vpop.f32.mrf.mxu0
        %v421 = vadd.f32 0.0, %v420
        %v422 = vpop.f32.mrf.mxu0
        %423 = vmatprep.mubr.f32.mxu0 0.0
        %424 = vmatmul.mubr.f32.gmra.mxu0 %v341
        %v425 = vpop.f32.mrf.mxu0
        %v426 = vadd.f32 0.0, %v425
        %v427 = vpop.f32.mrf.mxu0
        %428 = vmatprep.mubr.f32.mxu0 0.0
        %429 = vmatmul.mubr.f32.gmra.mxu0 %v344
        %v430 = vpop.f32.mrf.mxu0
        %v431 = vadd.f32 0.0, %v430
        %v432 = vpop.f32.mrf.mxu0
        %433 = vdwg.mxu0
        %438 = vrot.lane.b32.xlu0 %v416, 32
        %v439 = vpop.permute.xlu0 %438
        %440 = vrot.lane.b32.xlu0 %v421, 32
        %v441 = vpop.permute.xlu0 %440
        %442 = vrot.lane.b32.xlu0 %v426, 32
        %v443 = vpop.permute.xlu0 %442
        %444 = vrot.lane.b32.xlu0 %v431, 32
        %v445 = vpop.permute.xlu0 %444
        %vm450 = vcmask 523520
        %451 = vst.msk [vmem:[%s145] sm:$0xff] %vm450, %v439
        %452 = vst.msk [vmem:[%s145 + $0x8] sm:$0xff] %vm450, %v441
        %453 = vst.msk [vmem:[%s145 + $0x10] sm:$0xff] %vm450, %v443
        %454 = vst.msk [vmem:[%s145 + $0x18] sm:$0xff] %vm450, %v445
        %v455 = vld [vmem:[%s1] sm:$0xff]
        %v456 = vld [vmem:[%s1 + $0x8] sm:$0xff]
        %v457 = vld [vmem:[%s1 + $0x10] sm:$0xff]
        %v458 = vld [vmem:[%s1 + $0x18] sm:$0x7f]
        %459 = vset.pattern.permute.xlu0 2
        %460 = vperm.xlu0 %459, %v165
        %v461 = vpop.permute.xlu0 %460
        %462 = vset.pattern.permute.xlu0 2
        %463 = vperm.xlu0 %462, %v166
        %v464 = vpop.permute.xlu0 %463
        %465 = vset.pattern.permute.xlu0 2
        %466 = vperm.xlu0 %465, %v167
        %v467 = vpop.permute.xlu0 %466
        %468 = vset.pattern.permute.xlu0 2
        %469 = vperm.xlu0 %468, %v168
        %v470 = vpop.permute.xlu0 %469
        %vm471 = vcmp.eq.s32.totalorder %v174, %v461
        %vm472 = vcmp.eq.s32.totalorder %v174, %v464
        %vm473 = vcmp.eq.s32.totalorder %v174, %v467
        %vm474 = vcmp.eq.s32.totalorder %v174, %v470
        %v475 = vsel %vm471, 1, 0
        %v476 = vsel %vm472, 1, 0
        %v477 = vsel %vm473, 1, 0
        %v478 = vsel %vm474, 1, 0
        %v479 = vcvt.s32.f32 %v475
        %v480 = vcvt.s32.f32 %v476
        %v481 = vcvt.s32.f32 %v477
        %v482 = vcvt.s32.f32 %v478
        %v484 = vsel %vm199, %v479, 0
        %v487 = vsel %vm199, %v480, 0
        %v490 = vsel %vm199, %v481, 0
        %v493 = vsel %vm199, %v482, 0
        %v496 = vsel %vm212, %v458, 0
        %498 = vmatprep.subr.mxu0 0.0
        %499 = vmatpush1.msra.mxu0 0.0
        %500 = vmatprep.subr.mxu0 0.0
        %501 = vmatpush1.msra.mxu0 0.0
        %502 = vmatprep.subr.mxu0 0.0
        %503 = vmatpush1.msra.mxu0 0.0
        %504 = vmatprep.subr.mxu0 0.0
        %505 = vmatpush1.msra.mxu0 0.0
        %506 = vmatprep.subr.mxu0 0.0
        %507 = vmatpush1.msra.mxu0 0.0
        %508 = vmatprep.subr.mxu0 0.0
        %509 = vmatpush1.msra.mxu0 0.0
        %510 = vmatprep.subr.mxu0 0.0
        %511 = vmatpush1.msra.mxu0 0.0
        %512 = vmatprep.subr.mxu0 0.0
        %513 = vmatpush1.msra.mxu0 0.0
        %514 = vmatprep.subr.mxu0 0.0
        %515 = vmatpush1.msra.mxu0 0.0
        %516 = vmatprep.subr.mxu0 0.0
        %517 = vmatpush1.msra.mxu0 0.0
        %518 = vmatprep.subr.mxu0 0.0
        %519 = vmatpush1.msra.mxu0 0.0
        %520 = vmatprep.subr.mxu0 0.0
        %521 = vmatpush1.msra.mxu0 0.0
        %522 = vmatprep.subr.mxu0 0.0
        %523 = vmatpush1.msra.mxu0 %v496
        %524 = vmatprep.subr.mxu0 0.0
        %525 = vmatpush1.msra.mxu0 %v457
        %526 = vmatprep.subr.mxu0 0.0
        %527 = vmatpush1.msra.mxu0 %v456
        %528 = vmatprep.subr.mxu0 0.0
        %529 = vmatpush1.msra.mxu0 %v455
        %530 = vmatprep.subr.mxu0 0.0
        %531 = vmatpush2.msra.mxu0 0.0
        %532 = vmatprep.subr.mxu0 0.0
        %533 = vmatpush2.msra.mxu0 0.0
        %534 = vmatprep.subr.mxu0 0.0
        %535 = vmatpush2.msra.mxu0 0.0
        %536 = vmatprep.subr.mxu0 0.0
        %537 = vmatpush2.msra.mxu0 0.0
        %538 = vmatprep.subr.mxu0 0.0
        %539 = vmatpush2.msra.mxu0 0.0
        %540 = vmatprep.subr.mxu0 0.0
        %541 = vmatpush2.msra.mxu0 0.0
        %542 = vmatprep.subr.mxu0 0.0
        %543 = vmatpush2.msra.mxu0 0.0
        %544 = vmatprep.subr.mxu0 0.0
        %545 = vmatpush2.msra.mxu0 0.0
        %546 = vmatprep.subr.mxu0 0.0
        %547 = vmatpush2.msra.mxu0 0.0
        %548 = vmatprep.subr.mxu0 0.0
        %549 = vmatpush2.msra.mxu0 0.0
        %550 = vmatprep.subr.mxu0 0.0
        %551 = vmatpush2.msra.mxu0 0.0
        %552 = vmatprep.subr.mxu0 0.0
        %553 = vmatpush2.msra.mxu0 0.0
        %554 = vmatprep.subr.mxu0 0.0
        %555 = vmatpush2.msra.mxu0 0.0
        %556 = vmatprep.subr.mxu0 0.0
        %557 = vmatpush2.msra.mxu0 0.0
        %558 = vmatprep.subr.mxu0 0.0
        %559 = vmatpush2.msra.mxu0 0.0
        %560 = vmatprep.subr.mxu0 0.0
        %561 = vmatpush2.msra.mxu0 0.0
        %562 = vmatprep.mubr.f32.mxu0 0.0
        %563 = vmatmul.mubr.f32.gmra.mxu0 %v484
        %v564 = vpop.f32.mrf.mxu0
        %v565 = vadd.f32 0.0, %v564
        %v566 = vpop.f32.mrf.mxu0
        %567 = vmatprep.mubr.f32.mxu0 0.0
        %568 = vmatmul.mubr.f32.gmra.mxu0 %v487
        %v569 = vpop.f32.mrf.mxu0
        %v570 = vadd.f32 0.0, %v569
        %v571 = vpop.f32.mrf.mxu0
        %572 = vmatprep.mubr.f32.mxu0 0.0
        %573 = vmatmul.mubr.f32.gmra.mxu0 %v490
        %v574 = vpop.f32.mrf.mxu0
        %v575 = vadd.f32 0.0, %v574
        %v576 = vpop.f32.mrf.mxu0
        %577 = vmatprep.mubr.f32.mxu0 0.0
        %578 = vmatmul.mubr.f32.gmra.mxu0 %v493
        %v579 = vpop.f32.mrf.mxu0
        %v580 = vadd.f32 0.0, %v579
        %v581 = vpop.f32.mrf.mxu0
        %582 = vdwg.mxu0
        %587 = vrot.lane.b32.xlu0 %v565, 64
        %v588 = vpop.permute.xlu0 %587
        %589 = vrot.lane.b32.xlu0 %v570, 64
        %v590 = vpop.permute.xlu0 %589
        %591 = vrot.lane.b32.xlu0 %v575, 64
        %v592 = vpop.permute.xlu0 %591
        %593 = vrot.lane.b32.xlu0 %v580, 64
        %v594 = vpop.permute.xlu0 %593
        %vm599 = vcmask 785920
        %600 = vst.msk [vmem:[%s145] sm:$0xff] %vm599, %v588
        %601 = vst.msk [vmem:[%s145 + $0x8] sm:$0xff] %vm599, %v590
        %602 = vst.msk [vmem:[%s145 + $0x10] sm:$0xff] %vm599, %v592
        %603 = vst.msk [vmem:[%s145 + $0x18] sm:$0xff] %vm599, %v594
        %v604 = vld [vmem:[%s1] sm:$0xff]
        %v605 = vld [vmem:[%s1 + $0x8] sm:$0xff]
        %v606 = vld [vmem:[%s1 + $0x10] sm:$0xff]
        %v607 = vld [vmem:[%s1 + $0x18] sm:$0x7f]
        %608 = vset.pattern.permute.xlu0 3
        %609 = vperm.xlu0 %608, %v165
        %v610 = vpop.permute.xlu0 %609
        %611 = vset.pattern.permute.xlu0 3
        %612 = vperm.xlu0 %611, %v166
        %v613 = vpop.permute.xlu0 %612
        %614 = vset.pattern.permute.xlu0 3
        %615 = vperm.xlu0 %614, %v167
        %v616 = vpop.permute.xlu0 %615
        %617 = vset.pattern.permute.xlu0 3
        %618 = vperm.xlu0 %617, %v168
        %v619 = vpop.permute.xlu0 %618
        %vm620 = vcmp.eq.s32.totalorder %v174, %v610
        %vm621 = vcmp.eq.s32.totalorder %v174, %v613
        %vm622 = vcmp.eq.s32.totalorder %v174, %v616
        %vm623 = vcmp.eq.s32.totalorder %v174, %v619
        %v624 = vsel %vm620, 1, 0
        %v625 = vsel %vm621, 1, 0
        %v626 = vsel %vm622, 1, 0
        %v627 = vsel %vm623, 1, 0
        %v628 = vcvt.s32.f32 %v624
        %v629 = vcvt.s32.f32 %v625
        %v630 = vcvt.s32.f32 %v626
        %v631 = vcvt.s32.f32 %v627
        %v633 = vsel %vm199, %v628, 0
        %v636 = vsel %vm199, %v629, 0
        %v639 = vsel %vm199, %v630, 0
        %v642 = vsel %vm199, %v631, 0
        %v645 = vsel %vm212, %v607, 0
        %647 = vmatprep.subr.mxu0 0.0
        %648 = vmatpush1.msra.mxu0 0.0
        %649 = vmatprep.subr.mxu0 0.0
        %650 = vmatpush1.msra.mxu0 0.0
        %651 = vmatprep.subr.mxu0 0.0
        %652 = vmatpush1.msra.mxu0 0.0
        %653 = vmatprep.subr.mxu0 0.0
        %654 = vmatpush1.msra.mxu0 0.0
        %655 = vmatprep.subr.mxu0 0.0
        %656 = vmatpush1.msra.mxu0 0.0
        %657 = vmatprep.subr.mxu0 0.0
        %658 = vmatpush1.msra.mxu0 0.0
        %659 = vmatprep.subr.mxu0 0.0
        %660 = vmatpush1.msra.mxu0 0.0
        %661 = vmatprep.subr.mxu0 0.0
        %662 = vmatpush1.msra.mxu0 0.0
        %663 = vmatprep.subr.mxu0 0.0
        %664 = vmatpush1.msra.mxu0 0.0
        %665 = vmatprep.subr.mxu0 0.0
        %666 = vmatpush1.msra.mxu0 0.0
        %667 = vmatprep.subr.mxu0 0.0
        %668 = vmatpush1.msra.mxu0 0.0
        %669 = vmatprep.subr.mxu0 0.0
        %670 = vmatpush1.msra.mxu0 0.0
        %671 = vmatprep.subr.mxu0 0.0
        %672 = vmatpush1.msra.mxu0 %v645
        %673 = vmatprep.subr.mxu0 0.0
        %674 = vmatpush1.msra.mxu0 %v606
        %675 = vmatprep.subr.mxu0 0.0
        %676 = vmatpush1.msra.mxu0 %v605
        %677 = vmatprep.subr.mxu0 0.0
        %678 = vmatpush1.msra.mxu0 %v604
        %679 = vmatprep.subr.mxu0 0.0
        %680 = vmatpush2.msra.mxu0 0.0
        %681 = vmatprep.subr.mxu0 0.0
        %682 = vmatpush2.msra.mxu0 0.0
        %683 = vmatprep.subr.mxu0 0.0
        %684 = vmatpush2.msra.mxu0 0.0
        %685 = vmatprep.subr.mxu0 0.0
        %686 = vmatpush2.msra.mxu0 0.0
        %687 = vmatprep.subr.mxu0 0.0
        %688 = vmatpush2.msra.mxu0 0.0
        %689 = vmatprep.subr.mxu0 0.0
        %690 = vmatpush2.msra.mxu0 0.0
        %691 = vmatprep.subr.mxu0 0.0
        %692 = vmatpush2.msra.mxu0 0.0
        %693 = vmatprep.subr.mxu0 0.0
        %694 = vmatpush2.msra.mxu0 0.0
        %695 = vmatprep.subr.mxu0 0.0
        %696 = vmatpush2.msra.mxu0 0.0
        %697 = vmatprep.subr.mxu0 0.0
        %698 = vmatpush2.msra.mxu0 0.0
        %699 = vmatprep.subr.mxu0 0.0
        %700 = vmatpush2.msra.mxu0 0.0
        %701 = vmatprep.subr.mxu0 0.0
        %702 = vmatpush2.msra.mxu0 0.0
        %703 = vmatprep.subr.mxu0 0.0
        %704 = vmatpush2.msra.mxu0 0.0
        %705 = vmatprep.subr.mxu0 0.0
        %706 = vmatpush2.msra.mxu0 0.0
        %707 = vmatprep.subr.mxu0 0.0
        %708 = vmatpush2.msra.mxu0 0.0
        %709 = vmatprep.subr.mxu0 0.0
        %710 = vmatpush2.msra.mxu0 0.0
        %711 = vmatprep.mubr.f32.mxu0 0.0
        %712 = vmatmul.mubr.f32.gmra.mxu0 %v633
        %v713 = vpop.f32.mrf.mxu0
        %v714 = vadd.f32 0.0, %v713
        %v715 = vpop.f32.mrf.mxu0
        %716 = vmatprep.mubr.f32.mxu0 0.0
        %717 = vmatmul.mubr.f32.gmra.mxu0 %v636
        %v718 = vpop.f32.mrf.mxu0
        %v719 = vadd.f32 0.0, %v718
        %v720 = vpop.f32.mrf.mxu0
        %721 = vmatprep.mubr.f32.mxu0 0.0
        %722 = vmatmul.mubr.f32.gmra.mxu0 %v639
        %v723 = vpop.f32.mrf.mxu0
        %v724 = vadd.f32 0.0, %v723
        %v725 = vpop.f32.mrf.mxu0
        %726 = vmatprep.mubr.f32.mxu0 0.0
        %727 = vmatmul.mubr.f32.gmra.mxu0 %v642
        %v728 = vpop.f32.mrf.mxu0
        %v729 = vadd.f32 0.0, %v728
        %v730 = vpop.f32.mrf.mxu0
        %731 = vdwg.mxu0
        %736 = vrot.lane.b32.xlu0 %v714, 96
        %v737 = vpop.permute.xlu0 %736
        %738 = vrot.lane.b32.xlu0 %v719, 96
        %v739 = vpop.permute.xlu0 %738
        %740 = vrot.lane.b32.xlu0 %v724, 96
        %v741 = vpop.permute.xlu0 %740
        %742 = vrot.lane.b32.xlu0 %v729, 96
        %v743 = vpop.permute.xlu0 %742
        %vm748 = vcmask 1048320
        %749 = vst.msk [vmem:[%s145] sm:$0xff] %vm748, %v737
        %750 = vst.msk [vmem:[%s145 + $0x8] sm:$0xff] %vm748, %v739
        %751 = vst.msk [vmem:[%s145 + $0x10] sm:$0xff] %vm748, %v741
        %752 = vst.msk [vmem:[%s145 + $0x18] sm:$0xff] %vm748, %v743
        %s753 = sand.u32 %s68, 1
        %s754 = sand.u32 %s68, 1
        %s755 = smul.addr %s754, 32
        %s756 = scalar_lea.vmem [#allocation2], %s755
        // Predicated region
        $region29: #{rel_position_embedding.1} parent=27 // pred_check
          %p757 = pneg %p78
        $region30: #{rel_position_embedding.1} parent=27 // pred_check_branch
          %759 = sbr.rel (%p757) target = $region32
        $region31: #{rel_position_embedding.1} parent=27 // pred_region
          %s760 = smul.u32 4, %s13
          %s761 = ssub.s32 7, %s760
          %p762 = scmp.lt.s32.totalorder %s761, 4
          %s763 = scalar_select %p762, %s761, 4
          %s764 = smul.u32 128, %s763
          %p765 = scmp.ne.s32.totalorder 0, %s764
          %s766 = smul.addr %s760, 8
          %s767 = scalar_lea.vmem %s2, %s766
          // Predicated region
          $region33: #{rel_position_embedding.1} parent=31 // pred_check
            %p768 = pneg %p765
          $region34: #{rel_position_embedding.1} parent=31 // pred_check_branch
            %770 = sbr.rel (%p768) target = $region36
          $region35: #{rel_position_embedding.1} parent=31 // pred_region
            // Predicated region
            $region37: #{rel_position_embedding.1} parent=35 // pred_check
              _
            $region38: #{rel_position_embedding.1} parent=35 // pred_check_branch
              %772 = sbr.rel (0) target = $region40
            $region39: #{rel_position_embedding.1} parent=35 // pred_region
              // Predicated region
              $region59: #{rel_position_embedding.1} parent=39 // pred_check
                _
              $region60: #{rel_position_embedding.1} parent=39 // pred_check_branch
                %828 = sbr.rel (0) target = $region62
              $region61: #{rel_position_embedding.1} parent=39 // pred_region
                %s829 = sshrl.u32 %s763, 2
                // While loop
                $region63: #{rel_position_embedding.1} parent=61 // loop_pre_header
                  _
                $region64: #{rel_position_embedding.1} parent=61 // loop_header
                  %s831 = sphi 0, %s833
                  %p832 = scmp.ge.s32.totalorder %s831, %s829
                  %s836 = sphi 0, %s849
                  %s837 = sphi %s756, %s852
                  %s838 = sphi %s767, %s853
                $region65: #{rel_position_embedding.1} parent=61 // loop_header_branch
                  %835 = sbr.rel (%p832) target = $region69
                $region66: #{rel_position_embedding.1} parent=61 // loop_body
                  %v839 = vld [vmem:[%s837] sm:$0xff]
                  %840 = vst [vmem:[%s838] sm:$0xff] %v839
                  %v841 = vld [vmem:[%s837 + $0x8] sm:$0xff]
                  %842 = vst [vmem:[%s838 + $0x8] sm:$0xff] %v841
                  %v843 = vld [vmem:[%s837 + $0x10] sm:$0xff]
                  %844 = vst [vmem:[%s838 + $0x10] sm:$0xff] %v843
                  %v845 = vld [vmem:[%s837 + $0x18] sm:$0xff]
                  %846 = vst [vmem:[%s838 + $0x18] sm:$0xff] %v845
                  %s847 = sadd.s32 1, %s836
                  %p848 = scmp.ge.s32.totalorder %s847, %s829
                  %s849 = scalar_select %p848, 0, %s847
                  %s850 = smul.u32 %s849, 32
                  %s851 = smul.u32 %s849, 32
                  %s852 = scalar_lea.vmem %s756, %s850 [#allocation2]
                  %s853 = scalar_lea.vmem %s767, %s851
                $region67: #{rel_position_embedding.1} parent=61 // loop_footer
                  %s833 = sadd.s32 %s831, 1
                $region68: #{rel_position_embedding.1} parent=61 // loop_footer_branch
                  %830 = sbr.rel target = $region64
                $region69: #{rel_position_embedding.1} parent=61 // loop_exit
                  _
                %s854 = sshrl.u32 %s763, 2
                %s855 = sand.u32 %s763, 3
                %s856 = smul.u32 %s854, 4
                %s857 = smul.u32 8, %s856
                %s858 = scalar_lea.vmem %s756, %s857 [#allocation2]
                %s859 = smul.u32 8, %s856
                %s860 = scalar_lea.vmem %s767, %s859
                // While loop
                $region70: #{rel_position_embedding.1} parent=61 // loop_pre_header
                  _
                $region71: #{rel_position_embedding.1} parent=61 // loop_header
                  %s862 = sphi 0, %s864
                  %p863 = scmp.ge.s32.totalorder %s862, %s855
                  %s867 = sphi 0, %s874
                  %s868 = sphi %s858, %s877
                  %s869 = sphi %s860, %s878
                $region72: #{rel_position_embedding.1} parent=61 // loop_header_branch
                  %866 = sbr.rel (%p863) target = $region76
                $region73: #{rel_position_embedding.1} parent=61 // loop_body
                  %v870 = vld [vmem:[%s868] sm:$0xff]
                  %871 = vst [vmem:[%s869] sm:$0xff] %v870
                  %s872 = sadd.s32 1, %s867
                  %p873 = scmp.ge.s32.totalorder %s872, %s855
                  %s874 = scalar_select %p873, 0, %s872
                  %s875 = smul.u32 %s874, 8
                  %s876 = smul.u32 %s874, 8
                  %s877 = scalar_lea.vmem %s858, %s875 [#allocation2]
                  %s878 = scalar_lea.vmem %s860, %s876
                $region74: #{rel_position_embedding.1} parent=61 // loop_footer
                  %s864 = sadd.s32 %s862, 1
                $region75: #{rel_position_embedding.1} parent=61 // loop_footer_branch
                  %861 = sbr.rel target = $region71
                $region76: #{rel_position_embedding.1} parent=61 // loop_exit
                  _
              $region62: #{rel_position_embedding.1} parent=39 // pred_fallthru
                _
              // Predicated region
              $region77: #{rel_position_embedding.1} parent=39 // pred_check
                _
              $region78: #{rel_position_embedding.1} parent=39 // pred_check_branch
                %880 = sbr.rel target = $region80
              $region79: #{rel_position_embedding.1} parent=39 // pred_region
                _
              $region80: #{rel_position_embedding.1} parent=39 // pred_fallthru
                _
            $region40: #{rel_position_embedding.1} parent=35 // pred_fallthru
              _
            // Predicated region
            $region41: #{rel_position_embedding.1} parent=35 // pred_check
              _
            $region42: #{rel_position_embedding.1} parent=35 // pred_check_branch
              %774 = sbr.rel target = $region44
            $region43: #{rel_position_embedding.1} parent=35 // pred_region
              %s776 = ssub.s32 256, 1
              %s777 = sshrl.u32 %s763, 2
              // While loop
              $region45: #{rel_position_embedding.1} parent=43 // loop_pre_header
                _
              $region46: #{rel_position_embedding.1} parent=43 // loop_header
                %s779 = sphi 0, %s781
                %p780 = scmp.ge.s32.totalorder %s779, %s777
                %s784 = sphi 0, %s797
                %s785 = sphi %s756, %s800
                %s786 = sphi %s767, %s801
              $region47: #{rel_position_embedding.1} parent=43 // loop_header_branch
                %783 = sbr.rel (%p780) target = $region51
              $region48: #{rel_position_embedding.1} parent=43 // loop_body
                %v787 = vld [vmem:[%s785] sm:%s776]
                %788 = vst [vmem:[%s786] sm:%s776] %v787
                %v789 = vld [vmem:[%s785 + $0x8] sm:%s776]
                %790 = vst [vmem:[%s786 + $0x8] sm:%s776] %v789
                %v791 = vld [vmem:[%s785 + $0x10] sm:%s776]
                %792 = vst [vmem:[%s786 + $0x10] sm:%s776] %v791
                %v793 = vld [vmem:[%s785 + $0x18] sm:%s776]
                %794 = vst [vmem:[%s786 + $0x18] sm:%s776] %v793
                %s795 = sadd.s32 1, %s784
                %p796 = scmp.ge.s32.totalorder %s795, %s777
                %s797 = scalar_select %p796, 0, %s795
                %s798 = smul.u32 %s797, 32
                %s799 = smul.u32 %s797, 32
                %s800 = scalar_lea.vmem %s756, %s798 [#allocation2]
                %s801 = scalar_lea.vmem %s767, %s799
              $region49: #{rel_position_embedding.1} parent=43 // loop_footer
                %s781 = sadd.s32 %s779, 1
              $region50: #{rel_position_embedding.1} parent=43 // loop_footer_branch
                %778 = sbr.rel target = $region46
              $region51: #{rel_position_embedding.1} parent=43 // loop_exit
                _
              %s802 = sshrl.u32 %s763, 2
              %s803 = sand.u32 %s763, 3
              %s804 = smul.u32 %s802, 4
              %s805 = smul.u32 8, %s804
              %s806 = scalar_lea.vmem %s756, %s805 [#allocation2]
              %s807 = smul.u32 8, %s804
              %s808 = scalar_lea.vmem %s767, %s807
              // While loop
              $region52: #{rel_position_embedding.1} parent=43 // loop_pre_header
                _
              $region53: #{rel_position_embedding.1} parent=43 // loop_header
                %s810 = sphi 0, %s812
                %p811 = scmp.ge.s32.totalorder %s810, %s803
                %s815 = sphi 0, %s822
                %s816 = sphi %s806, %s825
                %s817 = sphi %s808, %s826
              $region54: #{rel_position_embedding.1} parent=43 // loop_header_branch
                %814 = sbr.rel (%p811) target = $region58
              $region55: #{rel_position_embedding.1} parent=43 // loop_body
                %v818 = vld [vmem:[%s816] sm:%s776]
                %819 = vst [vmem:[%s817] sm:%s776] %v818
                %s820 = sadd.s32 1, %s815
                %p821 = scmp.ge.s32.totalorder %s820, %s803
                %s822 = scalar_select %p821, 0, %s820
                %s823 = smul.u32 %s822, 8
                %s824 = smul.u32 %s822, 8
                %s825 = scalar_lea.vmem %s806, %s823 [#allocation2]
                %s826 = scalar_lea.vmem %s808, %s824
              $region56: #{rel_position_embedding.1} parent=43 // loop_footer
                %s812 = sadd.s32 %s810, 1
              $region57: #{rel_position_embedding.1} parent=43 // loop_footer_branch
                %809 = sbr.rel target = $region53
              $region58: #{rel_position_embedding.1} parent=43 // loop_exit
                _
            $region44: #{rel_position_embedding.1} parent=35 // pred_fallthru
              _
          $region36: #{rel_position_embedding.1} parent=31 // pred_fallthru
            _
          %881 = vnop
        $region32: #{rel_position_embedding.1} parent=27 // pred_fallthru
          _
      $region28: #{rel_position_embedding.1} parent=5 // pred_fallthru
        _
      %p882 = scmp.le.s32.totalorder 2, %s8
      // Predicated region
      $region81: #{rel_position_embedding.1} parent=5 // pred_check
        %p883 = pneg %p882
      $region82: #{rel_position_embedding.1} parent=5 // pred_check_branch
        %885 = sbr.rel (%p883) target = $region84
      $region83: #{rel_position_embedding.1} parent=5 // pred_region
        %s886 = ssub.s32 %s8, 2
        // Predicated region
        $region85: #{rel_position_embedding.1} parent=83 // pred_check
          %p887 = pneg %p84
        $region86: #{rel_position_embedding.1} parent=83 // pred_check_branch
          %889 = sbr.rel (%p887) target = $region88
        $region87: #{rel_position_embedding.1} parent=83 // pred_region
          %s890 = sand.u32 %s69, 1
          %s891 = sand.u32 %s69, 1
          %s892 = smul.addr %s891, 32
          %s893 = scalar_lea.vmem [#allocation2], %s892
        $region88: #{rel_position_embedding.1} parent=83 // pred_fallthru
          _
      $region84: #{rel_position_embedding.1} parent=5 // pred_fallthru
        _
    $region6: #{rel_position_embedding.1} parent=1 // loop_footer
      %s12 = sadd.s32 1, %s8
    $region7: #{rel_position_embedding.1} parent=1 // loop_footer_branch
      %7 = sbr.rel target = $region3
    $region8: #{rel_position_embedding.1} parent=1 // loop_exit
      _

</llo_original>
